<compile_context>
chip_gen: v7x
topology: tpu7x:2x2x1
jax: 0.10.0
libtpu: 0.0.40
codegen_flags: <defaults>
</compile_context>

<pallas_src>
import functools
import math

import jax
import jax.numpy as jnp
from jax.experimental import pallas as pl
from jax.experimental.pallas import tpu as pltpu


def _round_up(x, m):
    return ((x + m - 1) // m) * m


def _pick_batch_tile(B, block_b, *, min_steps=8, min_tile=256):
    """Largest batch tile <= block_b, subject to:
      * keep >= min_steps grid steps on large batches (pipeline slack + both
        v7x TensorCores via the "parallel" batch axis),
      * never shrink below min_tile rows (per-grid-step overhead floor),
      * a tile smaller than B must be a multiple of 128 because batch is the
        lane axis of the (K_sub, tb) output block.
    """
    cap = max(min_tile, _round_up(pl.cdiv(B, min_steps), 128))
    tb = min(block_b, cap)
    if tb >= B:
        return B  # single full-dim tile: any size is legal
    return max(128, (tb // 128) * 128)


def _attention_kernel(x_ref, w1_ref, w2_ref, out_ref, *, k_valid, inv_temp):
    # x_ref:   (TB, C)      cond tile (batch on sublanes)
    # w1_ref:  (C, H)       conv1 1x1 weight as a matmul matrix, VMEM-resident
    # w2_ref:  (K_sub, H)   conv2 1x1 weight in (out, in) layout, K padded to 8
    # out_ref: (K_sub, TB)  softmax weights, batch lane-dense (transposed)
    x = x_ref[...]

    # conv1x1 (C -> H) + ReLU; f32 accumulation on the MXU, operands keep dtype.
    h = jnp.dot(x, w1_ref[...], preferred_element_type=jnp.float32)
    h = jnp.maximum(h, 0.0).astype(x.dtype)

    # conv1x1 (H -> K), emitted transposed: contract H of both operands
    # (NT matmul) -> (K_sub, TB).  K sits on sublanes, batch stays lane-dense,
    # so the output store is a full-width vst 16x narrower than (TB, 128).
    logits = jax.lax.dot_general(
        w2_ref[...], h,
        dimension_numbers=(((1,), (1,)), ((), ())),
        preferred_element_type=jnp.float32,
    )
    # Exact f32 temperature scale (compile-time constant); avoids quantizing
    # W2/T into bf16 and is free under the memory-bound regime.
    logits = logits * inv_temp

    # Mask padded output channels (sublane rows) out of the softmax.
    if k_valid < logits.shape[0]:
        row = jax.lax.broadcasted_iota(jnp.int32, logits.shape, 0)
        logits = jnp.where(row < k_valid, logits, -1e30)

    # Numerically-stable softmax over the K sublanes.  Each lane column is an
    # independent batch element, so garbage lanes in a ragged last tile cannot
    # contaminate real rows (they are clipped by the bounded output store).
    m = jnp.max(logits, axis=0, keepdims=True)
    e = jnp.exp(logits - m)
    denom = jnp.sum(e, axis=0, keepdims=True)
    out_ref[...] = (e * pl.reciprocal(denom, approx=True)).astype(out_ref.dtype)


def attention_forward(cond, w1, w2, temperature, *, block_b=1024,
                      force_pallas=False):
    """cond: (B, C); w1: (C, H); w2: (H, K); temperature: Python scalar.
    Returns (B, K) softmax attention weights in cond's dtype."""
    B, C = cond.shape
    Cw, H = w1.shape
    Hw, K = w2.shape
    assert Cw == C and Hw == H
    inv_temp = 1.0 / float(temperature)

    # Small-shape fast path: a dedicated pallas_call is pure launch overhead at
    # module-default sizes; let XLA fuse the three tiny ops instead.
    if not force_pallas and B * C <= 16 * 1024:
        h = jnp.maximum(jnp.dot(cond, w1, preferred_element_type=jnp.float32), 0.0)
        logits = jnp.dot(h.astype(cond.dtype), w2,
                         preferred_element_type=jnp.float32)
        return jax.nn.softmax(logits * inv_temp, axis=-1).astype(cond.dtype)

    # w2 in (K, H) "conv OIHW" layout, K padded to a sublane multiple of 8
    # (padded rows are masked inside the kernel).
    k_sub = _round_up(K, 8)
    w2_kh = w2.T
    if k_sub != K:
        w2_kh = jnp.pad(w2_kh, ((0, k_sub - K), (0, 0)))

    tb = _pick_batch_tile(B, block_b)
    grid = (pl.cdiv(B, tb),)

    out_t = pl.pallas_call(
        functools.partial(_attention_kernel, k_valid=K, inv_temp=inv_temp),
        out_shape=jax.ShapeDtypeStruct((k_sub, B), cond.dtype),
        grid_spec=pltpu.PrefetchScalarGridSpec(
            num_scalar_prefetch=0,
            grid=grid,
            in_specs=[
                pl.BlockSpec((tb, C), lambda i: (i, 0)),     # x: tiled over batch
                pl.BlockSpec((C, H), lambda i: (0, 0)),      # w1: VMEM-resident
                pl.BlockSpec((k_sub, H), lambda i: (0, 0)),  # w2: VMEM-resident
            ],
            out_specs=pl.BlockSpec((k_sub, tb), lambda i: (0, i)),
        ),
        compiler_params=pltpu.CompilerParams(
            # Batch axis shards across both v7x TensorCores and pipelines on
            # all generations.  VMEM use at tb<=1024 is ~2 MiB -> no
            # vmem_limit_bytes override needed anywhere.
            dimension_semantics=("parallel",),
        ),
    )(cond, w1, w2_kh)

    # (K_sub, B) -> (B, K): only K*B elements move here (~32 KiB at B=2048),
    # versus the previous full 16x-padded slab slice pass.
    att = out_t if k_sub == K else out_t[:K]
    return att.T


def init_attention_params(key, cond_planes, ratio, K):
    """Deterministic kaiming_normal_(mode='fan_out', nonlinearity='relu') init
    for the two 1x1 conv weights, returned as (C_in, C_out) matmul matrices."""
    assert cond_planes > ratio
    hidden_planes = cond_planes // ratio
    k1, k2 = jax.random.split(key)
    # PyTorch conv weight shape (out, in, 1, 1); fan_out = out_channels * 1 * 1
    std1 = math.sqrt(2.0 / hidden_planes)
    std2 = math.sqrt(2.0 / K)
    w1_oihw = jax.random.normal(k1, (hidden_planes, cond_planes), jnp.float32) * std1
    w2_oihw = jax.random.normal(k2, (K, hidden_planes), jnp.float32) * std2
    # transpose to (C_in, C_out) for x @ W
    return w1_oihw.T, w2_oihw.T


def reference_forward(cond, w1, w2, temperature):
    h = jnp.maximum(cond @ w1, 0.0)
    logits = h @ w2
    return jax.nn.softmax(logits / temperature, axis=-1)


if __name__ == "__main__":
    key = jax.random.PRNGKey(0)
    temperature = 30.0

    # --- case 1: module-default-like tiny shapes, f32.  Forced through the
    #     Pallas path once (kernel correctness at small shapes); the default
    #     call exercises the fused-XLA fast path. ---
    B, cond_planes, ratio, K = 2, 32, 4, 8
    k_x, k_w = jax.random.split(key)
    cond = jax.random.normal(k_x, (B, cond_planes), jnp.float32)
    w1, w2 = init_attention_params(k_w, cond_planes, ratio, K)

    ref = reference_forward(cond, w1, w2, temperature)
    out_kernel = jax.block_until_ready(
        attention_forward(cond, w1, w2, temperature, force_pallas=True))
    out_fast = jax.block_until_ready(
        attention_forward(cond, w1, w2, temperature))
    assert out_kernel.shape == (B, K)
    assert jnp.allclose(out_kernel, ref, atol=1e-2, rtol=1e-2)
    assert jnp.allclose(out_fast, ref, atol=1e-2, rtol=1e-2)
    assert jnp.allclose(jnp.sum(out_kernel, axis=-1), 1.0, atol=1e-2)

    # --- case 2: large batch, bf16 -> exercises batch tiling (tb=256, grid=8,
    #     4 steps per v7x TC), pipelining, resident weights, megacore sharding
    #     and the bf16 MXU path with the transposed narrow output. ---
    B2, cond_planes2, ratio2, K2 = 2048, 256, 4, 8
    k_x2, k_w2 = jax.random.split(jax.random.PRNGKey(1))
    cond2 = jax.random.normal(k_x2, (B2, cond_planes2), jnp.float32)
    w1f, w2f = init_attention_params(k_w2, cond_planes2, ratio2, K2)

    out2 = jax.block_until_ready(
        attention_forward(cond2.astype(jnp.bfloat16), w1f.astype(jnp.bfloat16),
                          w2f.astype(jnp.bfloat16), temperature))
    ref2 = reference_forward(cond2, w1f, w2f, temperature)
    assert out2.shape == (B2, K2)
    assert jnp.allclose(out2.astype(jnp.float32), ref2, atol=3e-2, rtol=3e-2)
    assert jnp.allclose(jnp.sum(out2.astype(jnp.float32), axis=-1), 1.0, atol=3e-2)

    print("KERNEL_OK")
</pallas_src>

<mosaic_0001>
module attributes {stable_mosaic.version = 11 : i64} {
  func.func @_attention_kernel(%arg0: i32, %arg1: memref<2x32xf32, #tpu.memory_space<vmem>>, %arg2: memref<32x8xf32, #tpu.memory_space<vmem>>, %arg3: memref<8x8xf32, #tpu.memory_space<vmem>>, %arg4: memref<8x2xf32, #tpu.memory_space<vmem>>) attributes {dimension_semantics = [#tpu.dimension_semantics<parallel>], iteration_bounds = array<i64: 1>, scalar_prefetch = 0 : i64, scratch_operands = 0 : i64, tpu.core_type = #tpu.core_type<tc>, window_params = [{transform_indices = @transform_0, window_bounds = array<i64: 2, 32>}, {pipeline_mode = #tpu.pipeline_mode<synchronous>, transform_indices = @transform_1, window_bounds = array<i64: 32, 8>}, {pipeline_mode = #tpu.pipeline_mode<synchronous>, transform_indices = @transform_2, window_bounds = array<i64: 8, 8>}, {transform_indices = @transform_3, window_bounds = array<i64: 8, 2>}]} {
    %c0 = arith.constant 0 : index
    %c0_0 = arith.constant 0 : index
    %0 = vector.load %arg1[%c0, %c0_0] : memref<2x32xf32, #tpu.memory_space<vmem>>, vector<2x32xf32>
    %c0_1 = arith.constant 0 : index
    %c0_2 = arith.constant 0 : index
    %1 = vector.load %arg2[%c0_1, %c0_2] : memref<32x8xf32, #tpu.memory_space<vmem>>, vector<32x8xf32>
    %cst = arith.constant dense<0.000000e+00> : vector<2x8xf32>
    %2 = tpu.matmul %0, %1, %cst {dimension_numbers = #tpu.dot_dimension_numbers<[1], [0], [0], [1], [0, 0, 1, 1], [], []>} : vector<2x32xf32>, vector<32x8xf32>, vector<2x8xf32> -> vector<2x8xf32>
    %cst_3 = arith.constant 0.000000e+00 : f32
    %3 = vector.broadcast %cst_3 : f32 to vector<2x8xf32>
    %4 = arith.maximumf %2, %3 : vector<2x8xf32>
    %c0_4 = arith.constant 0 : index
    %c0_5 = arith.constant 0 : index
    %5 = vector.load %arg3[%c0_4, %c0_5] : memref<8x8xf32, #tpu.memory_space<vmem>>, vector<8x8xf32>
    %cst_6 = arith.constant dense<0.000000e+00> : vector<8x2xf32>
    %6 = tpu.matmul %5, %4, %cst_6 {dimension_numbers = #tpu.dot_dimension_numbers<[1], [1], [0], [0], [0, 0, 1, 0], [], []>} : vector<8x8xf32>, vector<2x8xf32>, vector<8x2xf32> -> vector<8x2xf32>
    %cst_7 = arith.constant 0.0333333351 : f32
    %7 = vector.broadcast %cst_7 : f32 to vector<8x2xf32>
    %8 = arith.mulf %6, %7 : vector<8x2xf32>
    %cst_8 = arith.constant dense<0xFF800000> : vector<2xf32>
    %9 = vector.multi_reduction <maximumf>, %8, %cst_8 [0] : vector<8x2xf32> to vector<2xf32>
    %10 = vector.shape_cast %9 : vector<2xf32> to vector<1x2xf32>
    %11 = vector.broadcast %10 : vector<1x2xf32> to vector<8x2xf32>
    %12 = arith.subf %8, %11 : vector<8x2xf32>
    %13 = math.exp %12 : vector<8x2xf32>
    %cst_9 = arith.constant dense<0.000000e+00> : vector<2xf32>
    %14 = vector.multi_reduction <add>, %13, %cst_9 [0] : vector<8x2xf32> to vector<2xf32>
    %15 = vector.shape_cast %14 : vector<2xf32> to vector<1x2xf32>
    %16 = tpu.reciprocal %15 {approx = true} : vector<1x2xf32> -> vector<1x2xf32>
    %17 = vector.broadcast %16 : vector<1x2xf32> to vector<8x2xf32>
    %18 = arith.mulf %13, %17 : vector<8x2xf32>
    %c0_10 = arith.constant 0 : index
    %c0_11 = arith.constant 0 : index
    %19 = vector.load %arg4[%c0_10, %c0_11] : memref<8x2xf32, #tpu.memory_space<vmem>>, vector<8x2xf32>
    tpu.vector_store %arg4[%c0_10, %c0_11], %18 {strides = array<i32>} : memref<8x2xf32, #tpu.memory_space<vmem>>, vector<8x2xf32>,
    return
  }
  func.func @transform_0(%arg0: i32) -> (i32, i32) {
    %c0_i32 = arith.constant 0 : i32
    %c0_i32_0 = arith.constant 0 : i32
    return %arg0, %c0_i32 : i32, i32
  }
  func.func @transform_1(%arg0: i32) -> (i32, i32) {
    %c0_i32 = arith.constant 0 : i32
    %c0_i32_0 = arith.constant 0 : i32
    %c0_i32_1 = arith.constant 0 : i32
    return %c0_i32, %c0_i32_0 : i32, i32
  }
  func.func @transform_2(%arg0: i32) -> (i32, i32) {
    %c0_i32 = arith.constant 0 : i32
    %c0_i32_0 = arith.constant 0 : i32
    %c0_i32_1 = arith.constant 0 : i32
    return %c0_i32, %c0_i32_0 : i32, i32
  }
  func.func @transform_3(%arg0: i32) -> (i32, i32) {
    %c0_i32 = arith.constant 0 : i32
    %c0_i32_0 = arith.constant 0 : i32
    return %c0_i32, %arg0 : i32, i32
  }
}

</mosaic_0001>

<llo_original>
// kernel: tpu_custom_call.1
$region0: #{tpu_custom_call.1}
  #allocation0 [shape = 'u32[]', space=smem, size = 0x4, offset = 0x4, fixed_abs, tag = 'smem constant byte address 0x4 - core index']
  #allocation1 [shape = 'u32[144,128]{1,0:T(1,128)}', space=vmem, size = 0x12000, scoped, tag = 'internal scratch']
  %s0 = inlined_call_operand.vmem [shape: f32[2,32], index: 0, kind: input, shape index: {}]
  %s1 = inlined_call_operand.vmem [shape: f32[32,8], index: 1, kind: input, shape index: {}]
  %s2 = inlined_call_operand.vmem [shape: f32[8,8], index: 2, kind: input, shape index: {}]
  %s3 = inlined_call_operand.vmem [shape: f32[8,2], index: 3, kind: output, shape index: {}]
  %s4 = sld [smem:[#allocation0]]
  $region22: #{tpu_custom_call.1} parent=0
    _
  %s6 = ssub.s32 1, %s4
  %s7 = scalar_select 0, %s6, %s4
  // Predicated region
  $region2: #{tpu_custom_call.1} parent=0 // pred_check
    _
  $region3: #{tpu_custom_call.1} parent=0 // pred_check_branch
    %9 = sbr.rel (0) target = $region5
  $region4: #{tpu_custom_call.1} parent=0 // pred_region
    _
  $region5: #{tpu_custom_call.1} parent=0 // pred_fallthru
    _
  // Predicated region
  $region6: #{tpu_custom_call.1} parent=0 // pred_check
    _
  $region7: #{tpu_custom_call.1} parent=0 // pred_check_branch
    %11 = sbr.rel (0) target = $region9
  $region8: #{tpu_custom_call.1} parent=0 // pred_region
    _
  $region9: #{tpu_custom_call.1} parent=0 // pred_fallthru
    _
  // Predicated region
  $region10: #{tpu_custom_call.1} parent=0 // pred_check
    _
  $region11: #{tpu_custom_call.1} parent=0 // pred_check_branch
    %13 = sbr.rel (0) target = $region13
  $region12: #{tpu_custom_call.1} parent=0 // pred_region
    _
  $region13: #{tpu_custom_call.1} parent=0 // pred_fallthru
    _
  %v14 = vld [vmem:[%s0] sm:$0x3]
  %v15 = vld [vmem:[%s1] sm:$0xff]
  %v16 = vld [vmem:[%s1 + $0x8] sm:$0xff]
  %v17 = vld [vmem:[%s1 + $0x10] sm:$0xff]
  %v18 = vld [vmem:[%s1 + $0x18] sm:$0xff]
  %vm19 = vcmask 261120
  %v21 = vsel %vm19, %v14, 0
  %23 = vmatprep.subr.mxu0 0.0
  %24 = vmatpush1.msra.mxu0 %v15
  %25 = vmatprep.subr.mxu0 0.0
  %26 = vmatpush1.msra.mxu0 %v16
  %27 = vmatprep.subr.mxu0 0.0
  %28 = vmatpush1.msra.mxu0 %v17
  %29 = vmatprep.subr.mxu0 0.0
  %30 = vmatpush1.msra.mxu0 %v18
  %31 = vmatprep.subr.mxu0 0.0
  %32 = vmatpush1.msra.mxu0 0.0
  %33 = vmatprep.subr.mxu0 0.0
  %34 = vmatpush1.msra.mxu0 0.0
  %35 = vmatprep.subr.mxu0 0.0
  %36 = vmatpush1.msra.mxu0 0.0
  %37 = vmatprep.subr.mxu0 0.0
  %38 = vmatpush1.msra.mxu0 0.0
  %39 = vmatprep.subr.mxu0 0.0
  %40 = vmatpush1.msra.mxu0 0.0
  %41 = vmatprep.subr.mxu0 0.0
  %42 = vmatpush1.msra.mxu0 0.0
  %43 = vmatprep.subr.mxu0 0.0
  %44 = vmatpush1.msra.mxu0 0.0
  %45 = vmatprep.subr.mxu0 0.0
  %46 = vmatpush1.msra.mxu0 0.0
  %47 = vmatprep.subr.mxu0 0.0
  %48 = vmatpush1.msra.mxu0 0.0
  %49 = vmatprep.subr.mxu0 0.0
  %50 = vmatpush1.msra.mxu0 0.0
  %51 = vmatprep.subr.mxu0 0.0
  %52 = vmatpush1.msra.mxu0 0.0
  %53 = vmatprep.subr.mxu0 0.0
  %54 = vmatpush1.msra.mxu0 0.0
  %55 = vmatprep.subr.mxu0 0.0
  %56 = vmatpush1.msra.mxu0 0.0
  %57 = vmatprep.subr.mxu0 0.0
  %58 = vmatpush1.msra.mxu0 0.0
  %59 = vmatprep.subr.mxu0 0.0
  %60 = vmatpush1.msra.mxu0 0.0
  %61 = vmatprep.subr.mxu0 0.0
  %62 = vmatpush1.msra.mxu0 0.0
  %63 = vmatprep.subr.mxu0 0.0
  %64 = vmatpush1.msra.mxu0 0.0
  %65 = vmatprep.subr.mxu0 0.0
  %66 = vmatpush1.msra.mxu0 0.0
  %67 = vmatprep.subr.mxu0 0.0
  %68 = vmatpush1.msra.mxu0 0.0
  %69 = vmatprep.subr.mxu0 0.0
  %70 = vmatpush1.msra.mxu0 0.0
  %71 = vmatprep.subr.mxu0 0.0
  %72 = vmatpush1.msra.mxu0 0.0
  %73 = vmatprep.subr.mxu0 0.0
  %74 = vmatpush1.msra.mxu0 0.0
  %75 = vmatprep.subr.mxu0 0.0
  %76 = vmatpush1.msra.mxu0 0.0
  %77 = vmatprep.subr.mxu0 0.0
  %78 = vmatpush1.msra.mxu0 0.0
  %79 = vmatprep.subr.mxu0 0.0
  %80 = vmatpush1.msra.mxu0 0.0
  %81 = vmatprep.subr.mxu0 0.0
  %82 = vmatpush1.msra.mxu0 0.0
  %83 = vmatprep.subr.mxu0 0.0
  %84 = vmatpush1.msra.mxu0 0.0
  %85 = vmatprep.subr.mxu0 0.0
  %86 = vmatpush1.msra.mxu0 0.0
  %87 = vmatprep.mubr.f32.mxu0 0.0
  %88 = vmatmul.mubr.f32.gmra.mrb[0].mxu0 %v21
  %v89 = vpop.f32.mrb[0].mxu0
  %v90 = vadd.f32 0.0, %v89
  %v91 = vpop.f32.mrb[0].mxu0
  %92 = vdwg.mxu0
  %v93 = vmax.f32 %v90, 0.0
  %v94 = vld [vmem:[%s2] sm:$0xff]
  %vm95 = vcmask 64512
  %v97 = vsel %vm95, %v94, 0
  %v100 = vsel %vm95, %v93, 0
  %102 = vmatprep.subr.mxu0 0.0
  %103 = vmatpush1.xpose.msra.mxu0 %v100
  %104 = vmatprep.subr.mxu0 0.0
  %105 = vmatpush1.xpose.msra.mxu0 0.0
  %106 = vmatprep.subr.mxu0 0.0
  %107 = vmatpush1.xpose.msra.mxu0 0.0
  %108 = vmatprep.subr.mxu0 0.0
  %109 = vmatpush1.xpose.msra.mxu0 0.0
  %110 = vmatprep.subr.mxu0 0.0
  %111 = vmatpush1.xpose.msra.mxu0 0.0
  %112 = vmatprep.subr.mxu0 0.0
  %113 = vmatpush1.xpose.msra.mxu0 0.0
  %114 = vmatprep.subr.mxu0 0.0
  %115 = vmatpush1.xpose.msra.mxu0 0.0
  %116 = vmatprep.subr.mxu0 0.0
  %117 = vmatpush1.xpose.msra.mxu0 0.0
  %118 = vmatprep.subr.mxu0 0.0
  %119 = vmatpush1.xpose.msra.mxu0 0.0
  %120 = vmatprep.subr.mxu0 0.0
  %121 = vmatpush1.xpose.msra.mxu0 0.0
  %122 = vmatprep.subr.mxu0 0.0
  %123 = vmatpush1.xpose.msra.mxu0 0.0
  %124 = vmatprep.subr.mxu0 0.0
  %125 = vmatpush1.xpose.msra.mxu0 0.0
  %126 = vmatprep.subr.mxu0 0.0
  %127 = vmatpush1.xpose.msra.mxu0 0.0
  %128 = vmatprep.subr.mxu0 0.0
  %129 = vmatpush1.xpose.msra.mxu0 0.0
  %130 = vmatprep.subr.mxu0 0.0
  %131 = vmatpush1.xpose.msra.mxu0 0.0
  %132 = vmatprep.subr.mxu0 0.0
  %133 = vmatpush1.xpose.msra.mxu0 0.0
  %134 = vmatprep.subr.mxu0 0.0
  %135 = vmatpush1.xpose.msra.mxu0 0.0
  %136 = vmatprep.subr.mxu0 0.0
  %137 = vmatpush1.xpose.msra.mxu0 0.0
  %138 = vmatprep.subr.mxu0 0.0
  %139 = vmatpush1.xpose.msra.mxu0 0.0
  %140 = vmatprep.subr.mxu0 0.0
  %141 = vmatpush1.xpose.msra.mxu0 0.0
  %142 = vmatprep.subr.mxu0 0.0
  %143 = vmatpush1.xpose.msra.mxu0 0.0
  %144 = vmatprep.subr.mxu0 0.0
  %145 = vmatpush1.xpose.msra.mxu0 0.0
  %146 = vmatprep.subr.mxu0 0.0
  %147 = vmatpush1.xpose.msra.mxu0 0.0
  %148 = vmatprep.subr.mxu0 0.0
  %149 = vmatpush1.xpose.msra.mxu0 0.0
  %150 = vmatprep.subr.mxu0 0.0
  %151 = vmatpush1.xpose.msra.mxu0 0.0
  %152 = vmatprep.subr.mxu0 0.0
  %153 = vmatpush1.xpose.msra.mxu0 0.0
  %154 = vmatprep.subr.mxu0 0.0
  %155 = vmatpush1.xpose.msra.mxu0 0.0
  %156 = vmatprep.subr.mxu0 0.0
  %157 = vmatpush1.xpose.msra.mxu0 0.0
  %158 = vmatprep.subr.mxu0 0.0
  %159 = vmatpush1.xpose.msra.mxu0 0.0
  %160 = vmatprep.subr.mxu0 0.0
  %161 = vmatpush1.xpose.msra.mxu0 0.0
  %162 = vmatprep.subr.mxu0 0.0
  %163 = vmatpush1.xpose.msra.mxu0 0.0
  %164 = vmatprep.subr.mxu0 0.0
  %165 = vmatpush1.xpose.msra.mxu0 0.0
  %166 = vmatprep.mubr.f32.mxu0 0.0
  %167 = vmatmul.mubr.f32.gmra.mrb[0].mxu0 %v97
  %v168 = vpop.f32.mrb[0].mxu0
  %v169 = vadd.f32 0.0, %v168
  %v170 = vpop.f32.mrb[0].mxu0
  %171 = vdwg.mxu0
  %v172 = vmul.f32 %v169, 0.033333335
  %vm173 = vcmask 15360
  %v174 = vsel %vm173, %v172, -inf
  %v175 = vrot.slane %v174, 4
  %v176 = vmax.f32 %v174, %v175
  %v177 = vrot.slane %v176, 2
  %v178 = vmax.f32 %v176, %v177
  %v179 = vrot.slane %v178, 1
  %v180 = vmax.f32 %v178, %v179
  %v181 = vsub.f32 %v172, %v180
  %v182 = vmul.f32 %v181, 1.442695
  %v183 = vpow.pop %v182
  %v184 = vsel %vm173, %v183, 0.0
  %v185 = vrot.slane %v184, 4
  %v186 = vadd.f32 %v184, %v185
  %v187 = vrot.slane %v186, 2
  %v188 = vadd.f32 %v186, %v187
  %v189 = vrot.slane %v188, 1
  %v190 = vadd.f32 %v188, %v189
  %v191 = vrcp.pop %v190
  %v192 = vmul.f32 %v183, %v191
  %193 = vst.msk [vmem:[%s3] sm:$0xff] %vm173, %v192
  // Predicated region
  $region14: #{tpu_custom_call.1} parent=0 // pred_check
    _
  $region15: #{tpu_custom_call.1} parent=0 // pred_check_branch
    %195 = sbr.rel (0) target = $region17
  $region16: #{tpu_custom_call.1} parent=0 // pred_region
    _
  $region17: #{tpu_custom_call.1} parent=0 // pred_fallthru
    _
  // Predicated region
  $region18: #{tpu_custom_call.1} parent=0 // pred_check
    _
  $region19: #{tpu_custom_call.1} parent=0 // pred_check_branch
    %197 = sbr.rel (0) target = $region21
  $region20: #{tpu_custom_call.1} parent=0 // pred_region
    _
  $region21: #{tpu_custom_call.1} parent=0 // pred_fallthru
    _

</llo_original>
